<compile_context>
chip_gen: v7x
topology: tpu7x:2x2x1
jax: 0.10.0
libtpu: 0.0.40
codegen_flags: <defaults>
</compile_context>

<pallas_src>
import functools

import jax
import jax.numpy as jnp
from jax.experimental import pallas as pl
from jax.experimental.pallas import tpu as pltpu

EPSILON = 1e-9  # matches the PyTorch module exactly


# --------------------------------------------------------------------------
# Kernels
# --------------------------------------------------------------------------
def _dice_fullbatch_kernel(alpha_ref, x_ref, o_ref, *, b_true):
    # alpha_ref: SMEM (1,) scalar; x_ref/o_ref: VMEM (B, TH) lane-dense tiles.
    x = x_ref[...].astype(jnp.float32)

    # Single pass over the resident vregs: sum and sum-of-squares together.
    s = jnp.sum(x, axis=0, keepdims=True)
    ss = jnp.sum(x * x, axis=0, keepdims=True)

    mean = s * jnp.float32(1.0 / b_true)
    if b_true > 1:
        inv_bm1 = jnp.float32(1.0 / (b_true - 1))
    else:
        # torch.var (unbiased) of a single sample is NaN; mirror that.
        inv_bm1 = jnp.float32(float("nan"))
    # Clamp: one-pass variance can go slightly negative from cancellation,
    # which would make rsqrt return NaN.
    var = jnp.maximum((ss - mean * s) * inv_bm1, jnp.float32(0.0))

    # sigmoid(z) == 0.5*(1 + tanh(0.5*z)); fold the 0.5 into the per-feature
    # scale row so the per-element transcendental count is 1 (tanh on EUP).
    half_scale = jnp.float32(0.5) * jax.lax.rsqrt(var + jnp.float32(EPSILON))
    t = jnp.tanh((x - mean) * half_scale)

    alpha = alpha_ref[0].astype(jnp.float32)
    c0 = jnp.float32(0.5) * (jnp.float32(1.0) + alpha)
    c1 = jnp.float32(0.5) * (jnp.float32(1.0) - alpha)
    # out = x*(alpha + (1-alpha)*p) = x*(c0 + c1*tanh(0.5*norm))
    o_ref[...] = (x * (c0 + c1 * t)).astype(o_ref.dtype)


def _dice_stats_kernel(x_ref, mean_ref, scale_ref, *, b_true):
    # grid = (n_h, n_b); B axis last ("arbitrary"); outputs stay resident
    # across the B axis and double as sum / sum-of-squares accumulators.
    bi = pl.program_id(1)

    @pl.when(bi == 0)
    def _():
        mean_ref[...] = jnp.zeros_like(mean_ref)
        scale_ref[...] = jnp.zeros_like(scale_ref)

    x = x_ref[...].astype(jnp.float32)
    mean_ref[...] += jnp.sum(x, axis=0, keepdims=True)
    scale_ref[...] += jnp.sum(x * x, axis=0, keepdims=True)

    @pl.when(bi == pl.num_programs(1) - 1)
    def _():
        s = mean_ref[...]
        ss = scale_ref[...]
        mean = s * jnp.float32(1.0 / b_true)
        if b_true > 1:
            inv_bm1 = jnp.float32(1.0 / (b_true - 1))
        else:
            inv_bm1 = jnp.float32(float("nan"))
        var = jnp.maximum((ss - mean * s) * inv_bm1, jnp.float32(0.0))
        mean_ref[...] = mean
        scale_ref[...] = jnp.float32(0.5) * jax.lax.rsqrt(var + jnp.float32(EPSILON))


def _dice_apply_kernel(alpha_ref, mean_ref, scale_ref, x_ref, o_ref):
    x = x_ref[...].astype(jnp.float32)
    t = jnp.tanh((x - mean_ref[...]) * scale_ref[...])
    alpha = alpha_ref[0].astype(jnp.float32)
    c0 = jnp.float32(0.5) * (jnp.float32(1.0) + alpha)
    c1 = jnp.float32(0.5) * (jnp.float32(1.0) - alpha)
    o_ref[...] = (x * (c0 + c1 * t)).astype(o_ref.dtype)


# --------------------------------------------------------------------------
# Tiling helpers
# --------------------------------------------------------------------------
def _tpu_vmem_capacity_bytes():
    try:
        cap = int(pltpu.get_tpu_info().vmem_capacity_bytes)
    except Exception:
        cap = 64 * 1024 * 1024  # conservative (v7x per-core VMEM)
    return max(cap, 32 * 1024 * 1024)


def _per_buffer_budget(cap):
    # Size of one VMEM tile buffer.  Working set is ~4 tiles (in + out, each
    # double-buffered), so cap//16 leaves plenty of headroom on every gen
    # (v5e/v6e 128 MiB, v7x 64 MiB).
    return max(512 * 1024, min(cap // 16, 6 * 1024 * 1024))


def _vmem_limit(working_set_bytes, cap):
    return int(min(cap - 8 * 1024 * 1024,
                   max(32 * 1024 * 1024, working_set_bytes + 4 * 1024 * 1024)))


def _pick_block_h(b, hp, itemsize, budget_bytes):
    """Lane-dense feature tile sized purely from the VMEM byte budget.

    hp is already a multiple of 128.  No artificial lane cap: bigger tiles
    amortize the ~0.35 us per-grid-step overhead for small B.
    """
    th = (budget_bytes // max(b * itemsize, 1)) // 128 * 128
    th = max(th, 128)
    th = min(th, hp)
    # Guarantee >= 2 grid steps when there are enough lanes: feeds both v7x
    # TensorCores (grid axis is "parallel") and keeps the DMA pipeline busy.
    if hp >= 256 and th >= hp:
        th = max(128, ((hp // 2 + 127) // 128) * 128)
    return th


# --------------------------------------------------------------------------
# Public wrapper
# --------------------------------------------------------------------------
def dice_forward(x, alpha, *, block_h=None, block_b=None,
                 force_two_pass=False, donate_x=False):
    """Dice activation forward pass.  x: (B, H); alpha: (1,) parameter."""
    b, h = x.shape
    itemsize = x.dtype.itemsize
    cap = _tpu_vmem_capacity_bytes()
    budget = _per_buffer_budget(cap)

    # Pad H to a multiple of 128 (lane-dense tiles / unmasked stores).
    hp = ((h + 127) // 128) * 128
    xp = x if hp == h else jnp.pad(x, ((0, 0), (0, hp - h)))

    # Fast path requires the full batch (at 128 lanes) to fit one tile buffer.
    two_pass = force_two_pass or (b * 128 * itemsize > budget)

    if not two_pass:
        th = block_h if block_h is not None else _pick_block_h(b, hp, itemsize, budget)
        grid = (pl.cdiv(hp, th),)
        working = 4 * b * th * itemsize  # in + out, double-buffered
        extra = {}
        if donate_x and hp == h:
            # Aliasing reuses x's HBM allocation for the output (saves an HBM
            # buffer); it does NOT remove the output store traffic.
            extra["input_output_aliases"] = {1: 0}
        out = pl.pallas_call(
            functools.partial(_dice_fullbatch_kernel, b_true=b),
            out_shape=jax.ShapeDtypeStruct((b, hp), x.dtype),
            grid=grid,
            in_specs=[
                pl.BlockSpec(memory_space=pltpu.SMEM),    # alpha scalar (1,)
                pl.BlockSpec((b, th), lambda i: (0, i)),  # x: full batch, H tile
            ],
            out_specs=pl.BlockSpec((b, th), lambda i: (0, i)),
            compiler_params=pltpu.CompilerParams(
                dimension_semantics=("parallel",),
                vmem_limit_bytes=_vmem_limit(working, cap),
            ),
            **extra,
        )(alpha, xp)
    else:
        # Two-pass B-tiled path: stats (reduction over B) then apply.
        th = block_h if block_h is not None else min(hp, 512)
        if block_b is not None:
            tb = block_b
        else:
            tb = (budget // max(th * itemsize, 1)) // 8 * 8
            tb = max(8, min(tb, ((b + 7) // 8) * 8))
        bp = ((b + tb - 1) // tb) * tb
        # Zero-padding rows is safe: they add 0 to sum / sum-of-squares and we
        # divide by the true B; padded output rows are sliced off below.
        xpp = xp if bp == b else jnp.pad(xp, ((0, bp - b), (0, 0)))
        n_h, n_b = pl.cdiv(hp, th), pl.cdiv(bp, tb)
        tile = tb * th * itemsize

        mean, scale = pl.pallas_call(
            functools.partial(_dice_stats_kernel, b_true=b),
            out_shape=(jax.ShapeDtypeStruct((1, hp), jnp.float32),
                       jax.ShapeDtypeStruct((1, hp), jnp.float32)),
            grid=(n_h, n_b),
            in_specs=[pl.BlockSpec((tb, th), lambda i, j: (j, i))],
            out_specs=(pl.BlockSpec((1, th), lambda i, j: (0, i)),
                       pl.BlockSpec((1, th), lambda i, j: (0, i))),
            compiler_params=pltpu.CompilerParams(
                dimension_semantics=("parallel", "arbitrary"),
                vmem_limit_bytes=_vmem_limit(2 * tile + 1024 * 1024, cap),
            ),
        )(xpp)

        out = pl.pallas_call(
            _dice_apply_kernel,
            out_shape=jax.ShapeDtypeStruct((bp, hp), x.dtype),
            grid=(n_h, n_b),
            in_specs=[
                pl.BlockSpec(memory_space=pltpu.SMEM),         # alpha
                pl.BlockSpec((1, th), lambda i, j: (0, i)),    # mean row
                pl.BlockSpec((1, th), lambda i, j: (0, i)),    # 0.5*rsqrt row
                pl.BlockSpec((tb, th), lambda i, j: (j, i)),   # x tile
            ],
            out_specs=pl.BlockSpec((tb, th), lambda i, j: (j, i)),
            compiler_params=pltpu.CompilerParams(
                dimension_semantics=("parallel", "parallel"),
                vmem_limit_bytes=_vmem_limit(4 * tile + 1024 * 1024, cap),
            ),
        )(alpha, mean, scale, xpp)
        if bp != b:
            out = out[:b]

    if hp != h:
        out = out[:, :h]
    return out


def dice_ref(x, alpha):
    # Pure-JAX reference mirroring the PyTorch module exactly.
    mean = jnp.mean(x, axis=0)
    var = jnp.var(x, axis=0, ddof=1)  # torch.var default: unbiased
    norm_x = (x - mean) / jnp.sqrt(var + EPSILON)
    p = jax.nn.sigmoid(norm_x)
    return alpha * x * (1.0 - p) + x * p


if __name__ == "__main__":
    key = jax.random.PRNGKey(0)
    k1, k2, k3 = jax.random.split(key, 3)

    # Case 1: module-scale shapes (H=32 -> padded to 128 lanes internally);
    # alpha initialized as in __init__ (zeros).
    B, H = 8, 32
    x = jax.random.normal(k1, (B, H), dtype=jnp.float32)
    alpha0 = jnp.zeros((1,), dtype=jnp.float32)
    out = jax.block_until_ready(dice_forward(x, alpha0))
    assert out.shape == x.shape and out.dtype == x.dtype
    assert jnp.allclose(out, dice_ref(x, alpha0), atol=1e-5, rtol=1e-4), "mismatch (alpha=0)"

    # Case 2: non-zero alpha exercises the full blend.
    alpha1 = jnp.array([0.25], dtype=jnp.float32)
    out2 = jax.block_until_ready(dice_forward(x, alpha1))
    assert jnp.allclose(out2, dice_ref(x, alpha1), atol=1e-5, rtol=1e-4), "mismatch (alpha=0.25)"

    # Case 3: lane-dense multi-tile fast path (grid=(3,), 128-wide tiles).
    B2, H2 = 16, 384
    x2 = jax.random.normal(k2, (B2, H2), dtype=jnp.float32)
    alpha2 = jnp.array([-0.5], dtype=jnp.float32)
    out3 = jax.block_until_ready(dice_forward(x2, alpha2, block_h=128))
    assert jnp.allclose(out3, dice_ref(x2, alpha2), atol=1e-5, rtol=1e-4), "mismatch (tiled)"

    # Case 4: two-pass B-tiled path (large-batch design), forced at small size.
    B3, H3 = 64, 256
    x3 = jax.random.normal(k3, (B3, H3), dtype=jnp.float32)
    alpha3 = jnp.array([0.3], dtype=jnp.float32)
    out4 = jax.block_until_ready(
        dice_forward(x3, alpha3, force_two_pass=True, block_h=128, block_b=16))
    assert jnp.allclose(out4, dice_ref(x3, alpha3), atol=1e-5, rtol=1e-4), "mismatch (two-pass)"

    print("KERNEL_OK")
</pallas_src>

<mosaic_0001>
module attributes {stable_mosaic.version = 11 : i64} {
  func.func @_dice_fullbatch_kernel(%arg0: i32, %arg1: memref<1xf32, #tpu.memory_space<smem>>, %arg2: memref<8x128xf32, #tpu.memory_space<vmem>>, %arg3: memref<8x128xf32, #tpu.memory_space<vmem>>) attributes {dimension_semantics = [#tpu.dimension_semantics<parallel>], iteration_bounds = array<i64: 1>, scalar_prefetch = 0 : i64, scratch_operands = 0 : i64, tpu.core_type = #tpu.core_type<tc>, window_params = [{transform_indices = @transform_0, window_bounds = array<i64: 1>}, {transform_indices = @transform_1, window_bounds = array<i64: 8, 128>}, {transform_indices = @transform_2, window_bounds = array<i64: 8, 128>}]} {
    %c0 = arith.constant 0 : index
    %c0_0 = arith.constant 0 : index
    %0 = vector.load %arg2[%c0, %c0_0] : memref<8x128xf32, #tpu.memory_space<vmem>>, vector<8x128xf32>
    %cst = arith.constant dense<0.000000e+00> : vector<128xf32>
    %1 = vector.multi_reduction <add>, %0, %cst [0] : vector<8x128xf32> to vector<128xf32>
    %2 = vector.shape_cast %1 : vector<128xf32> to vector<1x128xf32>
    %3 = arith.mulf %0, %0 : vector<8x128xf32>
    %cst_1 = arith.constant dense<0.000000e+00> : vector<128xf32>
    %4 = vector.multi_reduction <add>, %3, %cst_1 [0] : vector<8x128xf32> to vector<128xf32>
    %5 = vector.shape_cast %4 : vector<128xf32> to vector<1x128xf32>
    %cst_2 = arith.constant 1.250000e-01 : f32
    %6 = vector.broadcast %cst_2 : f32 to vector<1x128xf32>
    %7 = arith.mulf %2, %6 : vector<1x128xf32>
    %8 = arith.mulf %7, %2 : vector<1x128xf32>
    %9 = arith.subf %5, %8 : vector<1x128xf32>
    %cst_3 = arith.constant 0.142857149 : f32
    %10 = vector.broadcast %cst_3 : f32 to vector<1x128xf32>
    %11 = arith.mulf %9, %10 : vector<1x128xf32>
    %cst_4 = arith.constant 0.000000e+00 : f32
    %12 = vector.broadcast %cst_4 : f32 to vector<1x128xf32>
    %13 = arith.maximumf %11, %12 : vector<1x128xf32>
    %cst_5 = arith.constant 9.99999971E-10 : f32
    %14 = vector.broadcast %cst_5 : f32 to vector<1x128xf32>
    %15 = arith.addf %13, %14 : vector<1x128xf32>
    %16 = math.rsqrt %15 : vector<1x128xf32>
    %cst_6 = arith.constant 5.000000e-01 : f32
    %17 = vector.broadcast %cst_6 : f32 to vector<1x128xf32>
    %18 = arith.mulf %17, %16 : vector<1x128xf32>
    %19 = vector.broadcast %7 : vector<1x128xf32> to vector<8x128xf32>
    %20 = arith.subf %0, %19 : vector<8x128xf32>
    %21 = vector.broadcast %18 : vector<1x128xf32> to vector<8x128xf32>
    %22 = arith.mulf %20, %21 : vector<8x128xf32>
    %23 = math.tanh %22 : vector<8x128xf32>
    %c0_7 = arith.constant 0 : index
    %24 = memref.load %arg1[%c0_7] : memref<1xf32, #tpu.memory_space<smem>>
    %cst_8 = arith.constant 1.000000e+00 : f32
    %25 = arith.addf %cst_8, %24 : f32
    %cst_9 = arith.constant 5.000000e-01 : f32
    %26 = arith.mulf %cst_9, %25 : f32
    %cst_10 = arith.constant 1.000000e+00 : f32
    %27 = arith.subf %cst_10, %24 : f32
    %cst_11 = arith.constant 5.000000e-01 : f32
    %28 = arith.mulf %cst_11, %27 : f32
    %29 = vector.broadcast %28 : f32 to vector<8x128xf32>
    %30 = arith.mulf %29, %23 : vector<8x128xf32>
    %31 = vector.broadcast %26 : f32 to vector<8x128xf32>
    %32 = arith.addf %31, %30 : vector<8x128xf32>
    %33 = arith.mulf %0, %32 : vector<8x128xf32>
    %c0_12 = arith.constant 0 : index
    %c0_13 = arith.constant 0 : index
    %34 = vector.load %arg3[%c0_12, %c0_13] : memref<8x128xf32, #tpu.memory_space<vmem>>, vector<8x128xf32>
    tpu.vector_store %arg3[%c0_12, %c0_13], %33 {strides = array<i32>} : memref<8x128xf32, #tpu.memory_space<vmem>>, vector<8x128xf32>,
    return
  }
  func.func @transform_0(%arg0: i32) -> i32 {
    %c0_i32 = arith.constant 0 : i32
    %c0_i32_0 = arith.constant 0 : i32
    return %c0_i32 : i32
  }
  func.func @transform_1(%arg0: i32) -> (i32, i32) {
    %c0_i32 = arith.constant 0 : i32
    %c0_i32_0 = arith.constant 0 : i32
    return %c0_i32, %arg0 : i32, i32
  }
  func.func @transform_2(%arg0: i32) -> (i32, i32) {
    %c0_i32 = arith.constant 0 : i32
    %c0_i32_0 = arith.constant 0 : i32
    return %c0_i32, %arg0 : i32, i32
  }
}

</mosaic_0001>

<llo_original>
// kernel: tpu_custom_call.1
$region0: #{tpu_custom_call.1}
  #allocation0 [shape = 'u32[]', space=smem, size = 0x4, offset = 0x4, fixed_abs, tag = 'smem constant byte address 0x4 - core index']
  #allocation1 [shape = 'u32[144,128]{1,0:T(1,128)}', space=vmem, size = 0x12000, scoped, tag = 'internal scratch']
  #allocation2 [shape = 'f32[1]{0:T(128)S(6)}', space=smem, size = 0x200, scoped, tag = 'scoped memory for tpu_custom_call.1']
  %s0 = inlined_call_operand.<no memory space> [shape: f32[1], index: 0, kind: input, shape index: {}]
  %s1 = inlined_call_operand.hbm [shape: f32[8,128], index: 1, kind: input, shape index: {}]
  %s2 = inlined_call_operand.hbm [shape: f32[8,128], index: 2, kind: output, shape index: {}]
  %s3 = sld [smem:[#allocation0]]
  $region22: #{tpu_custom_call.1} parent=0
    _
  %s5 = ssub.s32 1, %s3
  %s6 = scalar_select 0, %s5, %s3
  %7 = sst [smem:[#allocation2]] %s0
  $region1: #{tpu_custom_call.1} parent=0
    #allocation3 [shape = 'u8[4096]{0}', space=vmem, size = 0x1000, scoped, tag = 'input window, operand 1, single buffered']
    #allocation4 [shape = 's32[1]{0}', space=sflag, size = 0x4, scoped, tag = 'scoped memory for tpu_custom_call.1']
    #allocation5 [shape = 's32[1]{0}', space=sflag, size = 0x4, scoped, tag = 'scoped memory for tpu_custom_call.1']
    #allocation6 [shape = 'u8[4096]{0}', space=vmem, size = 0x1000, scoped, tag = 'output window, operand 0, single buffered']
    %8 = vsyncpa [#allocation4], 0
    %9 = vsyncpa [#allocation5], 0
    // Predicated region
    $region2: #{tpu_custom_call.1} parent=1 // pred_check
      _
    $region3: #{tpu_custom_call.1} parent=1 // pred_check_branch
      %11 = sbr.rel (0) target = $region5
    $region4: #{tpu_custom_call.1} parent=1 // pred_region
      _
    $region5: #{tpu_custom_call.1} parent=1 // pred_fallthru
      _
    // Predicated region
    $region6: #{tpu_custom_call.1} parent=1 // pred_check
      _
    $region7: #{tpu_custom_call.1} parent=1 // pred_check_branch
      %13 = sbr.rel (0) target = $region9
    $region8: #{tpu_custom_call.1} parent=1 // pred_region
      %s15 = ssub.s32 128, 128
      %16 = vsyncadd [#allocation4], %s15
      %s18 = sshll.u32 [#allocation3], 4
      %s19 = int_to_ptr.vmem [resolvable:$true] %s18
      %21 = dma.hbm_to_vmem [thread:$0]  %s1, 128, %s19, [#allocation4]
    $region9: #{tpu_custom_call.1} parent=1 // pred_fallthru
      _
    // Predicated region
    $region10: #{tpu_custom_call.1} parent=1 // pred_check
      _
    $region11: #{tpu_custom_call.1} parent=1 // pred_check_branch
      %23 = sbr.rel (0) target = $region13
    $region12: #{tpu_custom_call.1} parent=1 // pred_region
      %24 = dma.done [#allocation4], 128
    $region13: #{tpu_custom_call.1} parent=1 // pred_fallthru
      _
    %v25 = vld [vmem:[#allocation3] sm:$0xff]
    %v26 = vrot.slane %v25, 4
    %v27 = vadd.f32 %v25, %v26
    %v28 = vrot.slane %v27, 2
    %v29 = vadd.f32 %v27, %v28
    %v30 = vrot.slane %v29, 1
    %v31 = vadd.f32 %v29, %v30
    %v32 = vmul.f32 %v25, %v25
    %v33 = vrot.slane %v32, 4
    %v34 = vadd.f32 %v32, %v33
    %v35 = vrot.slane %v34, 2
    %v36 = vadd.f32 %v34, %v35
    %v37 = vrot.slane %v36, 1
    %v38 = vadd.f32 %v36, %v37
    %v39 = vmul.f32 %v31, 0.125
    %v40 = vmul.f32 %v39, %v31
    %v41 = vsub.f32 %v38, %v40
    %v42 = vmul.f32 %v41, 0.14285715
    %v43 = vmax.f32 %v42, 0.0
    %v44 = vadd.f32 %v43, 1e-09
    %v45 = vrsqrt.pop %v44
    %v46 = vmul.f32 %v45, 0.5
    %v47 = vsub.f32 %v25, %v39
    %v48 = vmul.f32 %v47, %v46
    %v49 = vtanh.pop %v48
    %s50 = sld [smem:[#allocation2]]
    %s51 = sadd.f32 %s50, 1.0
    %s52 = smul.f32 %s51, 0.5
    %s53 = ssub.f32 1.0, %s50
    %s54 = smul.f32 %s53, 0.5
    %v55 = vstv %s54
    %v56 = vmul.f32 %v55, %v49
    %v57 = vstv %s52
    %v58 = vadd.f32 %v57, %v56
    %v59 = vmul.f32 %v25, %v58
    %60 = vst [vmem:[#allocation6] sm:$0xff] %v59
    // Predicated region
    $region14: #{tpu_custom_call.1} parent=1 // pred_check
      _
    $region15: #{tpu_custom_call.1} parent=1 // pred_check_branch
      %62 = sbr.rel (0) target = $region17
    $region16: #{tpu_custom_call.1} parent=1 // pred_region
      %s64 = ssub.s32 128, 128
      %65 = vsyncadd [#allocation5], %s64
      %s67 = sshll.u32 [#allocation6], 4
      %s68 = int_to_ptr.vmem [resolvable:$true] %s67
      %70 = dma.vmem_to_hbm [thread:$0]  %s68, 128, %s2, [#allocation5]
    $region17: #{tpu_custom_call.1} parent=1 // pred_fallthru
      _
    // Predicated region
    $region18: #{tpu_custom_call.1} parent=1 // pred_check
      _
    $region19: #{tpu_custom_call.1} parent=1 // pred_check_branch
      %72 = sbr.rel (0) target = $region21
    $region20: #{tpu_custom_call.1} parent=1 // pred_region
      %73 = dma.done [#allocation5], 128
    $region21: #{tpu_custom_call.1} parent=1 // pred_fallthru
      _
    %74 = vsyncpa [#allocation4], 1
    %75 = vsyncpa [#allocation5], 1

</llo_original>
